<compile_context>
chip_gen: v7x
topology: tpu7x:2x2x1
jax: 0.10.0
libtpu: 0.0.40
codegen_flags: <defaults>
</compile_context>

<pallas_src>
import jax
import jax.numpy as jnp
from jax.experimental import pallas as pl
from jax.experimental.pallas import tpu as pltpu


def couple_layer_kernel(z_ref, mask_ref, w1_ref, b1_ref, w2_ref, b2_ref,
                        z_out_ref, s_out_ref):
    """Processes one (D, TILE_B) batch tile in feature-major (lane-dense) layout."""
    d = z_out_ref.shape[0]

    z = z_ref[...]                       # (D, TB)  f32
    mask = mask_ref[...]                 # (D, 1)   f32, broadcasts over lanes
    one_minus_mask = 1.0 - mask

    z_masked = mask * z                  # z_ = mask * z

    # Fused first layer of both subnets: (2H, D) @ (D, TB) -> (2H, TB).
    h = jnp.tanh(
        jnp.dot(w1_ref[...], z_masked.astype(jnp.bfloat16),
                preferred_element_type=jnp.float32)
        + b1_ref[...])

    # Fused (block-diagonal) second layer: (2D, 2H) @ (2H, TB) -> (2D, TB).
    y = (jnp.dot(w2_ref[...], h.astype(jnp.bfloat16),
                 preferred_element_type=jnp.float32)
         + b2_ref[...])

    s = jnp.tanh(y[:d, :]) * one_minus_mask      # scale head (tanh output)
    t = y[d:, :] * one_minus_mask                # translation head (linear)

    # z = (1 - mask) * (z - t) * exp(-s) + z_
    z_out_ref[...] = (one_minus_mask * (z - t) * jnp.exp(-s)
                      + z_masked).astype(z_out_ref.dtype)
    s_out_ref[...] = s.astype(s_out_ref.dtype)


def couple_layer(z, mask, params, *, tile_b=128):
    """z: (B, D) f32, mask: (D,) or (1, D) per-feature mask. Returns (z_new, s)."""
    B, D = z.shape
    H = params["ws1"].shape[1]

    # --- wrapper-side layout plumbing (weight fusion + transposes) ----------
    w1_cat = jnp.concatenate([params["ws1"], params["wt1"]], axis=1)   # (D, 2H)
    b1_cat = jnp.concatenate([params["bs1"], params["bt1"]], axis=1)   # (1, 2H)
    zeros = jnp.zeros((H, D), params["ws2"].dtype)
    w2_bd = jnp.concatenate(
        [jnp.concatenate([params["ws2"], zeros], axis=1),
         jnp.concatenate([zeros, params["wt2"]], axis=1)], axis=0)     # (2H, 2D)
    b2_cat = jnp.concatenate([params["bs2"], params["bt2"]], axis=1)   # (1, 2D)

    w1_t = w1_cat.T.astype(jnp.bfloat16)    # (2H, D)
    b1_t = b1_cat.T.astype(jnp.float32)     # (2H, 1)
    w2_t = w2_bd.T.astype(jnp.bfloat16)     # (2D, 2H)
    b2_t = b2_cat.T.astype(jnp.float32)     # (2D, 1)

    # mask kept at its natural per-feature size (no (B, D) broadcast on host).
    mask_col = jnp.reshape(jnp.broadcast_to(mask, (1, D)), (D, 1)).astype(z.dtype)

    # Feature-major activations; pad batch up to a tile multiple.
    num_tiles = pl.cdiv(B, tile_b)
    Bp = num_tiles * tile_b
    z_t = z.T                               # (D, B)
    if Bp != B:
        z_t = jnp.pad(z_t, ((0, 0), (0, Bp - B)))

    flops = 2 * Bp * (D * 2 * H + 2 * H * 2 * D)
    transcendentals = Bp * (2 * H + 2 * D)
    bytes_accessed = (3 * Bp * D * 4 + D * 4
                      + w1_t.size * 2 + w2_t.size * 2
                      + (b1_t.size + b2_t.size) * 4)

    batch_spec = pl.BlockSpec((D, tile_b), lambda i: (0, i))
    resident = lambda shape: pl.BlockSpec(shape, lambda i: (0, 0))

    z_out_t, s_t = pl.pallas_call(
        couple_layer_kernel,
        out_shape=(jax.ShapeDtypeStruct((D, Bp), z.dtype),
                   jax.ShapeDtypeStruct((D, Bp), z.dtype)),
        grid=(num_tiles,),
        in_specs=[
            batch_spec,                      # z            (D, Bp)
            resident((D, 1)),                # mask         (D, 1)
            resident((2 * H, D)),            # fused layer-1 weight
            resident((2 * H, 1)),            # fused layer-1 bias
            resident((2 * D, 2 * H)),        # block-diag layer-2 weight
            resident((2 * D, 1)),            # fused layer-2 bias
        ],
        out_specs=(batch_spec, batch_spec),
        input_output_aliases={0: 0},         # reuse z's HBM buffer for z_out
        compiler_params=pltpu.CompilerParams(
            dimension_semantics=("parallel",)),
        cost_estimate=pl.CostEstimate(
            flops=flops, transcendentals=transcendentals,
            bytes_accessed=bytes_accessed),
    )(z_t, mask_col, w1_t, b1_t, w2_t, b2_t)

    return z_out_t[:, :B].T, s_t[:, :B].T


def _reference(z, mask, params):
    """Pure-JAX (f32) reference mirroring the PyTorch forward exactly."""
    mask = jnp.broadcast_to(mask, z.shape).astype(z.dtype)
    z_ = mask * z
    hs = jnp.tanh(z_ @ params["ws1"] + params["bs1"])
    s = jnp.tanh(hs @ params["ws2"] + params["bs2"]) * (1.0 - mask)
    ht = jnp.tanh(z_ @ params["wt1"] + params["bt1"])
    t = (ht @ params["wt2"] + params["bt2"]) * (1.0 - mask)
    z_new = (1.0 - mask) * (z - t) * jnp.exp(-s) + z_
    return z_new, s


def init_params(key, d, h):
    ks = jax.random.split(key, 8)
    scale = 0.1
    return {
        "ws1": scale * jax.random.normal(ks[0], (d, h), jnp.float32),
        "bs1": scale * jax.random.normal(ks[1], (1, h), jnp.float32),
        "ws2": scale * jax.random.normal(ks[2], (h, d), jnp.float32),
        "bs2": scale * jax.random.normal(ks[3], (1, d), jnp.float32),
        "wt1": scale * jax.random.normal(ks[4], (d, h), jnp.float32),
        "bt1": scale * jax.random.normal(ks[5], (1, h), jnp.float32),
        "wt2": scale * jax.random.normal(ks[6], (h, d), jnp.float32),
        "bt2": scale * jax.random.normal(ks[7], (1, d), jnp.float32),
    }


if __name__ == "__main__":
    # Small shapes; B deliberately not a tile multiple to exercise padding.
    B, D, H = 300, 8, 32
    key = jax.random.PRNGKey(0)
    k_param, k_z = jax.random.split(key)

    params = init_params(k_param, D, H)
    z = jax.random.normal(k_z, (B, D), jnp.float32)
    # Alternating binary feature mask, shape (1, D), broadcast like PyTorch.
    mask = jnp.tile(jnp.array([1.0, 0.0], jnp.float32), D // 2)[None, :]

    z_new, s = couple_layer(z, mask, params, tile_b=128)
    jax.block_until_ready((z_new, s))

    z_ref, s_ref = _reference(z, mask, params)
    # bf16 matmul inputs (f32 accumulation) -> looser tolerance than pure f32.
    assert jnp.allclose(z_new, z_ref, atol=3e-2, rtol=3e-2), \
        float(jnp.max(jnp.abs(z_new - z_ref)))
    assert jnp.allclose(s, s_ref, atol=3e-2, rtol=3e-2), \
        float(jnp.max(jnp.abs(s - s_ref)))

    print("KERNEL_OK")
</pallas_src>

<mosaic_0001>
module attributes {stable_mosaic.version = 11 : i64} {
  func.func @couple_layer_kernel(%arg0: i32, %arg1: memref<8x128xf32, #tpu.memory_space<vmem>>, %arg2: memref<8x1xf32, #tpu.memory_space<vmem>>, %arg3: memref<64x8xbf16, #tpu.memory_space<vmem>>, %arg4: memref<64x1xf32, #tpu.memory_space<vmem>>, %arg5: memref<16x64xbf16, #tpu.memory_space<vmem>>, %arg6: memref<16x1xf32, #tpu.memory_space<vmem>>, %arg7: memref<8x128xf32, #tpu.memory_space<vmem>>, %arg8: memref<8x128xf32, #tpu.memory_space<vmem>>) attributes {dimension_semantics = [#tpu.dimension_semantics<parallel>], iteration_bounds = array<i64: 3>, scalar_prefetch = 0 : i64, scratch_operands = 0 : i64, tpu.core_type = #tpu.core_type<tc>, window_params = [{transform_indices = @transform_0, window_bounds = array<i64: 8, 128>}, {pipeline_mode = #tpu.pipeline_mode<synchronous>, transform_indices = @transform_1, window_bounds = array<i64: 8, 1>}, {pipeline_mode = #tpu.pipeline_mode<synchronous>, transform_indices = @transform_2, window_bounds = array<i64: 64, 8>}, {pipeline_mode = #tpu.pipeline_mode<synchronous>, transform_indices = @transform_3, window_bounds = array<i64: 64, 1>}, {pipeline_mode = #tpu.pipeline_mode<synchronous>, transform_indices = @transform_4, window_bounds = array<i64: 16, 64>}, {pipeline_mode = #tpu.pipeline_mode<synchronous>, transform_indices = @transform_5, window_bounds = array<i64: 16, 1>}, {transform_indices = @transform_6, window_bounds = array<i64: 8, 128>}, {transform_indices = @transform_7, window_bounds = array<i64: 8, 128>}]} {
    %c0 = arith.constant 0 : index
    %c0_0 = arith.constant 0 : index
    %0 = vector.load %arg1[%c0, %c0_0] : memref<8x128xf32, #tpu.memory_space<vmem>>, vector<8x128xf32>
    %c0_1 = arith.constant 0 : index
    %c0_2 = arith.constant 0 : index
    %1 = vector.load %arg2[%c0_1, %c0_2] : memref<8x1xf32, #tpu.memory_space<vmem>>, vector<8x1xf32>
    %cst = arith.constant 1.000000e+00 : f32
    %2 = vector.broadcast %cst : f32 to vector<8x1xf32>
    %3 = arith.subf %2, %1 : vector<8x1xf32>
    %4 = vector.broadcast %1 : vector<8x1xf32> to vector<8x128xf32>
    %5 = arith.mulf %4, %0 : vector<8x128xf32>
    %c0_3 = arith.constant 0 : index
    %c0_4 = arith.constant 0 : index
    %6 = vector.load %arg3[%c0_3, %c0_4] : memref<64x8xbf16, #tpu.memory_space<vmem>>, vector<64x8xbf16>
    %7 = arith.truncf %5 : vector<8x128xf32> to vector<8x128xbf16>
    %cst_5 = arith.constant dense<0.000000e+00> : vector<64x128xf32>
    %8 = tpu.matmul %6, %7, %cst_5 {dimension_numbers = #tpu.dot_dimension_numbers<[1], [0], [0], [1], [0, 0, 1, 1], [], []>} : vector<64x8xbf16>, vector<8x128xbf16>, vector<64x128xf32> -> vector<64x128xf32>
    %c0_6 = arith.constant 0 : index
    %c0_7 = arith.constant 0 : index
    %9 = vector.load %arg4[%c0_6, %c0_7] : memref<64x1xf32, #tpu.memory_space<vmem>>, vector<64x1xf32>
    %10 = vector.broadcast %9 : vector<64x1xf32> to vector<64x128xf32>
    %11 = arith.addf %8, %10 : vector<64x128xf32>
    %12 = math.tanh %11 : vector<64x128xf32>
    %c0_8 = arith.constant 0 : index
    %c0_9 = arith.constant 0 : index
    %13 = vector.load %arg5[%c0_8, %c0_9] : memref<16x64xbf16, #tpu.memory_space<vmem>>, vector<16x64xbf16>
    %14 = arith.truncf %12 : vector<64x128xf32> to vector<64x128xbf16>
    %cst_10 = arith.constant dense<0.000000e+00> : vector<16x128xf32>
    %15 = tpu.matmul %13, %14, %cst_10 {dimension_numbers = #tpu.dot_dimension_numbers<[1], [0], [0], [1], [0, 0, 1, 1], [], []>} : vector<16x64xbf16>, vector<64x128xbf16>, vector<16x128xf32> -> vector<16x128xf32>
    %c0_11 = arith.constant 0 : index
    %c0_12 = arith.constant 0 : index
    %16 = vector.load %arg6[%c0_11, %c0_12] : memref<16x1xf32, #tpu.memory_space<vmem>>, vector<16x1xf32>
    %17 = vector.broadcast %16 : vector<16x1xf32> to vector<16x128xf32>
    %18 = arith.addf %15, %17 : vector<16x128xf32>
    %19 = vector.extract_strided_slice %18 {offsets = [0, 0], sizes = [8, 128], strides = [1, 1]} : vector<16x128xf32> to vector<8x128xf32>
    %20 = math.tanh %19 : vector<8x128xf32>
    %21 = vector.broadcast %3 : vector<8x1xf32> to vector<8x128xf32>
    %22 = arith.mulf %20, %21 : vector<8x128xf32>
    %23 = vector.extract_strided_slice %18 {offsets = [8, 0], sizes = [8, 128], strides = [1, 1]} : vector<16x128xf32> to vector<8x128xf32>
    %24 = vector.broadcast %3 : vector<8x1xf32> to vector<8x128xf32>
    %25 = arith.mulf %23, %24 : vector<8x128xf32>
    %26 = arith.subf %0, %25 : vector<8x128xf32>
    %27 = vector.broadcast %3 : vector<8x1xf32> to vector<8x128xf32>
    %28 = arith.mulf %27, %26 : vector<8x128xf32>
    %cst_13 = arith.constant 0.000000e+00 : f32
    %29 = vector.broadcast %cst_13 : f32 to vector<8x128xf32>
    %30 = arith.subf %29, %22 : vector<8x128xf32>
    %31 = math.exp %30 : vector<8x128xf32>
    %32 = arith.mulf %28, %31 : vector<8x128xf32>
    %33 = arith.addf %32, %5 : vector<8x128xf32>
    %c0_14 = arith.constant 0 : index
    %c0_15 = arith.constant 0 : index
    %34 = vector.load %arg7[%c0_14, %c0_15] : memref<8x128xf32, #tpu.memory_space<vmem>>, vector<8x128xf32>
    tpu.vector_store %arg7[%c0_14, %c0_15], %33 {strides = array<i32>} : memref<8x128xf32, #tpu.memory_space<vmem>>, vector<8x128xf32>,
    %c0_16 = arith.constant 0 : index
    %c0_17 = arith.constant 0 : index
    %35 = vector.load %arg8[%c0_16, %c0_17] : memref<8x128xf32, #tpu.memory_space<vmem>>, vector<8x128xf32>
    tpu.vector_store %arg8[%c0_16, %c0_17], %22 {strides = array<i32>} : memref<8x128xf32, #tpu.memory_space<vmem>>, vector<8x128xf32>,
    return
  }
  func.func @transform_0(%arg0: i32) -> (i32, i32) {
    %c0_i32 = arith.constant 0 : i32
    %c0_i32_0 = arith.constant 0 : i32
    return %c0_i32, %arg0 : i32, i32
  }
  func.func @transform_1(%arg0: i32) -> (i32, i32) {
    %c0_i32 = arith.constant 0 : i32
    %c0_i32_0 = arith.constant 0 : i32
    %c0_i32_1 = arith.constant 0 : i32
    return %c0_i32, %c0_i32_0 : i32, i32
  }
  func.func @transform_2(%arg0: i32) -> (i32, i32) {
    %c0_i32 = arith.constant 0 : i32
    %c0_i32_0 = arith.constant 0 : i32
    %c0_i32_1 = arith.constant 0 : i32
    return %c0_i32, %c0_i32_0 : i32, i32
  }
  func.func @transform_3(%arg0: i32) -> (i32, i32) {
    %c0_i32 = arith.constant 0 : i32
    %c0_i32_0 = arith.constant 0 : i32
    %c0_i32_1 = arith.constant 0 : i32
    return %c0_i32, %c0_i32_0 : i32, i32
  }
  func.func @transform_4(%arg0: i32) -> (i32, i32) {
    %c0_i32 = arith.constant 0 : i32
    %c0_i32_0 = arith.constant 0 : i32
    %c0_i32_1 = arith.constant 0 : i32
    return %c0_i32, %c0_i32_0 : i32, i32
  }
  func.func @transform_5(%arg0: i32) -> (i32, i32) {
    %c0_i32 = arith.constant 0 : i32
    %c0_i32_0 = arith.constant 0 : i32
    %c0_i32_1 = arith.constant 0 : i32
    return %c0_i32, %c0_i32_0 : i32, i32
  }
  func.func @transform_6(%arg0: i32) -> (i32, i32) {
    %c0_i32 = arith.constant 0 : i32
    %c0_i32_0 = arith.constant 0 : i32
    return %c0_i32, %arg0 : i32, i32
  }
  func.func @transform_7(%arg0: i32) -> (i32, i32) {
    %c0_i32 = arith.constant 0 : i32
    %c0_i32_0 = arith.constant 0 : i32
    return %c0_i32, %arg0 : i32, i32
  }
}

</mosaic_0001>

<llo_original>
// kernel: tpu_custom_call.1
$region0: #{tpu_custom_call.1}
  #allocation0 [shape = 'u32[]', space=smem, size = 0x4, offset = 0x4, fixed_abs, tag = 'smem constant byte address 0x4 - core index']
  #allocation1 [shape = 'u32[144,128]{1,0:T(1,128)}', space=vmem, size = 0x12000, scoped, tag = 'internal scratch']
  %s0 = inlined_call_operand.hbm [shape: f32[8,384], index: 0, kind: input, shape index: {}, may-alias: {0,6}]
  %s1 = inlined_call_operand.vmem [shape: f32[8,1], index: 1, kind: input, shape index: {}]
  %s2 = inlined_call_operand.vmem [shape: bf16[64,8], index: 2, kind: input, shape index: {}]
  %s3 = inlined_call_operand.vmem [shape: f32[64,1], index: 3, kind: input, shape index: {}]
  %s4 = inlined_call_operand.vmem [shape: bf16[16,64], index: 4, kind: input, shape index: {}]
  %s5 = inlined_call_operand.vmem [shape: f32[16,1], index: 5, kind: input, shape index: {}]
  %s6 = inlined_call_operand.hbm [shape: f32[8,384], index: 6, kind: output, shape index: {0}, may-alias: {0,6}]
  %s7 = inlined_call_operand.hbm [shape: f32[8,384], index: 7, kind: output, shape index: {1}]
  %8 = xla_tuple %s6, %s7
  %s9 = sld [smem:[#allocation0]]
  $region69: #{tpu_custom_call.1} parent=0
    _
  %s11 = ssub.s32 1, %s9
  %s12 = scalar_select 0, %s11, %s9
  $region1: #{tpu_custom_call.1} parent=0
    #allocation2 [shape = 'u8[8192]{0}', space=vmem, size = 0x2000, scoped, tag = 'input window, operand 0']
    #allocation3 [shape = 's32[2]{0}', space=sflag, size = 0x8, scoped, tag = 'scoped memory for tpu_custom_call.1']
    #allocation4 [shape = 's32[2]{0}', space=sflag, size = 0x8, scoped, tag = 'scoped memory for tpu_custom_call.1']
    #allocation5 [shape = 'u8[8192]{0}', space=vmem, size = 0x2000, scoped, tag = 'output window, operand 0']
    #allocation6 [shape = 'u8[8192]{0}', space=vmem, size = 0x2000, scoped, tag = 'output window, operand 1']
    #allocation7 [shape = 's32[2]{0}', space=sflag, size = 0x8, scoped, tag = 'scoped memory for tpu_custom_call.1']
    %13 = vsyncpa [#allocation3], 0
    %s14 = scalar_lea.sflag [#allocation3], 1
    %15 = vsyncpa %s14, 0
    %16 = vsyncpa [#allocation4], 0
    %s17 = scalar_lea.sflag [#allocation4], 1
    %18 = vsyncpa %s17, 0
    %19 = vsyncpa [#allocation7], 0
    %s20 = scalar_lea.sflag [#allocation7], 1
    %21 = vsyncpa %s20, 0
    loop: start=0, step=1, limit=5
    $region2: #{tpu_custom_call.1} parent=1 // loop_pre_header
      _
    $region3: #{tpu_custom_call.1} parent=1 // loop_header
      %s23 = sphi 0, %s27
      %p24 = scmp.ge.s32.totalorder %s23, 5
      %s33 = sphi 0, %s35
      %s36 = sphi 0, %s33
      %s37 = sphi 0, %s36
      %s53 = sphi 0, %s37
      %s57 = sphi 0, %s57
      %s59 = sphi 0, %s57
      %s60 = sphi 0, %s59
      %s74 = sphi 0, %s60
      %s78 = sphi 0, %s78
      %s80 = sphi 0, %s78
      %s81 = sphi 0, %s80
      %s95 = sphi 0, %s81
      %s99 = sphi 0, %s99
      %s101 = sphi 0, %s99
      %s102 = sphi 0, %s101
      %s116 = sphi 0, %s102
      %s120 = sphi 0, %s120
      %s122 = sphi 0, %s120
      %s123 = sphi 0, %s122
      %s137 = sphi 0, %s123
      %s141 = sphi 0, %s141
      %s143 = sphi 0, %s141
      %s144 = sphi 0, %s143
      %s158 = sphi 0, %s144
      %s164 = sphi 0, %s166
      %s167 = sphi 0, %s164
      %s168 = sphi 0, %s167
      %s184 = sphi 0, %s168
      %s190 = sphi 0, %s192
      %s193 = sphi 0, %s190
      %s194 = sphi 0, %s193
      %s210 = sphi 0, %s194
    $region4: #{tpu_custom_call.1} parent=1 // loop_header_branch
      %26 = sbr.rel (%p24) target = $region8
    $region5: #{tpu_custom_call.1} parent=1 // loop_body
      %s28 = ssub.s32 %s23, 1
      %s29 = ssub.s32 %s23, 2
      %s30 = sadd.s32 %s23, 1
      %s31 = ssub.s32 %s23, %s30
      %p32 = scmp.eq.s32.totalorder %s31, 0
      %s34 = sadd.s32 %s33, 1
      %s35 = scalar_select %p32, %s33, %s34
      %p38 = pneg %p32
      %p39 = scmp.eq.s32.totalorder %s23, 2
      %p40 = por %p38, %p39
      %p41 = scmp.ne.s32.totalorder %s33, %s36
      %p42 = scmp.eq.s32.totalorder %s23, 0
      %p43 = por %p41, %p42
      %p44 = scmp.ne.s32.totalorder %s33, %s36
      %p45 = scmp.eq.s32.totalorder %s28, 2
      %p46 = por %p44, %p45
      %p47 = scmp.ne.s32.totalorder %s36, %s37
      %p48 = scmp.eq.s32.totalorder %s28, 0
      %p49 = por %p47, %p48
      %p50 = scmp.ne.s32.totalorder %s36, %s37
      %p51 = scmp.eq.s32.totalorder %s29, 2
      %p52 = por %p50, %p51
      %p54 = scmp.ne.s32.totalorder %s37, %s53
      %p55 = scmp.eq.s32.totalorder %s29, 0
      %p56 = por %p54, %p55
      %s58 = sadd.s32 %s57, 1
      %p61 = scmp.eq.s32.totalorder %s23, 2
      %p62 = scmp.ne.s32.totalorder %s57, %s59
      %p63 = scmp.eq.s32.totalorder %s23, 0
      %p64 = por %p62, %p63
      %p65 = scmp.ne.s32.totalorder %s57, %s59
      %p66 = scmp.eq.s32.totalorder %s28, 2
      %p67 = por %p65, %p66
      %p68 = scmp.ne.s32.totalorder %s59, %s60
      %p69 = scmp.eq.s32.totalorder %s28, 0
      %p70 = por %p68, %p69
      %p71 = scmp.ne.s32.totalorder %s59, %s60
      %p72 = scmp.eq.s32.totalorder %s29, 2
      %p73 = por %p71, %p72
      %p75 = scmp.ne.s32.totalorder %s60, %s74
      %p76 = scmp.eq.s32.totalorder %s29, 0
      %p77 = por %p75, %p76
      %s79 = sadd.s32 %s78, 1
      %p82 = scmp.eq.s32.totalorder %s23, 2
      %p83 = scmp.ne.s32.totalorder %s78, %s80
      %p84 = scmp.eq.s32.totalorder %s23, 0
      %p85 = por %p83, %p84
      %p86 = scmp.ne.s32.totalorder %s78, %s80
      %p87 = scmp.eq.s32.totalorder %s28, 2
      %p88 = por %p86, %p87
      %p89 = scmp.ne.s32.totalorder %s80, %s81
      %p90 = scmp.eq.s32.totalorder %s28, 0
      %p91 = por %p89, %p90
      %p92 = scmp.ne.s32.totalorder %s80, %s81
      %p93 = scmp.eq.s32.totalorder %s29, 2
      %p94 = por %p92, %p93
      %p96 = scmp.ne.s32.totalorder %s81, %s95
      %p97 = scmp.eq.s32.totalorder %s29, 0
      %p98 = por %p96, %p97
      %s100 = sadd.s32 %s99, 1
      %p103 = scmp.eq.s32.totalorder %s23, 2
      %p104 = scmp.ne.s32.totalorder %s99, %s101
      %p105 = scmp.eq.s32.totalorder %s23, 0
      %p106 = por %p104, %p105
      %p107 = scmp.ne.s32.totalorder %s99, %s101
      %p108 = scmp.eq.s32.totalorder %s28, 2
      %p109 = por %p107, %p108
      %p110 = scmp.ne.s32.totalorder %s101, %s102
      %p111 = scmp.eq.s32.totalorder %s28, 0
      %p112 = por %p110, %p111
      %p113 = scmp.ne.s32.totalorder %s101, %s102
      %p114 = scmp.eq.s32.totalorder %s29, 2
      %p115 = por %p113, %p114
      %p117 = scmp.ne.s32.totalorder %s102, %s116
      %p118 = scmp.eq.s32.totalorder %s29, 0
      %p119 = por %p117, %p118
      %s121 = sadd.s32 %s120, 1
      %p124 = scmp.eq.s32.totalorder %s23, 2
      %p125 = scmp.ne.s32.totalorder %s120, %s122
      %p126 = scmp.eq.s32.totalorder %s23, 0
      %p127 = por %p125, %p126
      %p128 = scmp.ne.s32.totalorder %s120, %s122
      %p129 = scmp.eq.s32.totalorder %s28, 2
      %p130 = por %p128, %p129
      %p131 = scmp.ne.s32.totalorder %s122, %s123
      %p132 = scmp.eq.s32.totalorder %s28, 0
      %p133 = por %p131, %p132
      %p134 = scmp.ne.s32.totalorder %s122, %s123
      %p135 = scmp.eq.s32.totalorder %s29, 2
      %p136 = por %p134, %p135
      %p138 = scmp.ne.s32.totalorder %s123, %s137
      %p139 = scmp.eq.s32.totalorder %s29, 0
      %p140 = por %p138, %p139
      %s142 = sadd.s32 %s141, 1
      %p145 = scmp.eq.s32.totalorder %s23, 2
      %p146 = scmp.ne.s32.totalorder %s141, %s143
      %p147 = scmp.eq.s32.totalorder %s23, 0
      %p148 = por %p146, %p147
      %p149 = scmp.ne.s32.totalorder %s141, %s143
      %p150 = scmp.eq.s32.totalorder %s28, 2
      %p151 = por %p149, %p150
      %p152 = scmp.ne.s32.totalorder %s143, %s144
      %p153 = scmp.eq.s32.totalorder %s28, 0
      %p154 = por %p152, %p153
      %p155 = scmp.ne.s32.totalorder %s143, %s144
      %p156 = scmp.eq.s32.totalorder %s29, 2
      %p157 = por %p155, %p156
      %p159 = scmp.ne.s32.totalorder %s144, %s158
      %p160 = scmp.eq.s32.totalorder %s29, 0
      %p161 = por %p159, %p160
      %s162 = ssub.s32 %s23, %s30
      %p163 = scmp.eq.s32.totalorder %s162, 0
      %s165 = sadd.s32 %s164, 1
      %s166 = scalar_select %p163, %s164, %s165
      %p169 = pneg %p163
      %p170 = scmp.eq.s32.totalorder %s23, 2
      %p171 = por %p169, %p170
      %p172 = scmp.ne.s32.totalorder %s164, %s167
      %p173 = scmp.eq.s32.totalorder %s23, 0
      %p174 = por %p172, %p173
      %p175 = scmp.ne.s32.totalorder %s164, %s167
      %p176 = scmp.eq.s32.totalorder %s28, 2
      %p177 = por %p175, %p176
      %p178 = scmp.ne.s32.totalorder %s167, %s168
      %p179 = scmp.eq.s32.totalorder %s28, 0
      %p180 = por %p178, %p179
      %p181 = scmp.ne.s32.totalorder %s167, %s168
      %p182 = scmp.eq.s32.totalorder %s29, 2
      %p183 = por %p181, %p182
      %p185 = scmp.ne.s32.totalorder %s168, %s184
      %p186 = scmp.eq.s32.totalorder %s29, 0
      %p187 = por %p185, %p186
      %s188 = ssub.s32 %s23, %s30
      %p189 = scmp.eq.s32.totalorder %s188, 0
      %s191 = sadd.s32 %s190, 1
      %s192 = scalar_select %p189, %s190, %s191
      %p195 = pneg %p189
      %p196 = scmp.eq.s32.totalorder %s23, 2
      %p197 = por %p195, %p196
      %p198 = scmp.ne.s32.totalorder %s190, %s193
      %p199 = scmp.eq.s32.totalorder %s23, 0
      %p200 = por %p198, %p199
      %p201 = scmp.ne.s32.totalorder %s190, %s193
      %p202 = scmp.eq.s32.totalorder %s28, 2
      %p203 = por %p201, %p202
      %p204 = scmp.ne.s32.totalorder %s193, %s194
      %p205 = scmp.eq.s32.totalorder %s28, 0
      %p206 = por %p204, %p205
      %p207 = scmp.ne.s32.totalorder %s193, %s194
      %p208 = scmp.eq.s32.totalorder %s29, 2
      %p209 = por %p207, %p208
      %p211 = scmp.ne.s32.totalorder %s194, %s210
      %p212 = scmp.eq.s32.totalorder %s29, 0
      %p213 = por %p211, %p212
      %p214 = scmp.le.s32.totalorder 1, %s23
      %p215 = scmp.lt.s32.totalorder %s23, 4
      %p216 = pnand %p214, %p215
      %p217 = pneg %p216
      // Predicated region
      $region9: #{tpu_custom_call.1} parent=5 // pred_check
        _
      $region10: #{tpu_custom_call.1} parent=5 // pred_check_branch
        %219 = sbr.rel (%p216) target = $region12
      $region11: #{tpu_custom_call.1} parent=5 // pred_region
        %s220 = ssub.s32 %s23, 1
        // Predicated region
        $region13: #{tpu_custom_call.1} parent=11 // pred_check
          %p221 = pneg %p70
        $region14: #{tpu_custom_call.1} parent=11 // pred_check_branch
          %223 = sbr.rel (%p221) target = $region16
        $region15: #{tpu_custom_call.1} parent=11 // pred_region
          _
        $region16: #{tpu_custom_call.1} parent=11 // pred_fallthru
          _
        // Predicated region
        $region17: #{tpu_custom_call.1} parent=11 // pred_check
          %p224 = pneg %p91
        $region18: #{tpu_custom_call.1} parent=11 // pred_check_branch
          %226 = sbr.rel (%p224) target = $region20
        $region19: #{tpu_custom_call.1} parent=11 // pred_region
          _
        $region20: #{tpu_custom_call.1} parent=11 // pred_fallthru
          _
        // Predicated region
        $region21: #{tpu_custom_call.1} parent=11 // pred_check
          %p227 = pneg %p112
        $region22: #{tpu_custom_call.1} parent=11 // pred_check_branch
          %229 = sbr.rel (%p227) target = $region24
        $region23: #{tpu_custom_call.1} parent=11 // pred_region
          _
        $region24: #{tpu_custom_call.1} parent=11 // pred_fallthru
          _
        // Predicated region
        $region25: #{tpu_custom_call.1} parent=11 // pred_check
          %p230 = pneg %p133
        $region26: #{tpu_custom_call.1} parent=11 // pred_check_branch
          %232 = sbr.rel (%p230) target = $region28
        $region27: #{tpu_custom_call.1} parent=11 // pred_region
          _
        $region28: #{tpu_custom_call.1} parent=11 // pred_fallthru
          _
        // Predicated region
        $region29: #{tpu_custom_call.1} parent=11 // pred_check
          %p233 = pneg %p154
        $region30: #{tpu_custom_call.1} parent=11 // pred_check_branch
          %235 = sbr.rel (%p233) target = $region32
        $region31: #{tpu_custom_call.1} parent=11 // pred_region
          _
        $region32: #{tpu_custom_call.1} parent=11 // pred_fallthru
          _
      $region12: #{tpu_custom_call.1} parent=5 // pred_fallthru
        _
      %p236 = scmp.lt.s32.totalorder %s23, 3
      // Predicated region
      $region33: #{tpu_custom_call.1} parent=5 // pred_check
        %p237 = pneg %p236
      $region34: #{tpu_custom_call.1} parent=5 // pred_check_branch
        %239 = sbr.rel (%p237) target = $region36
      $region35: #{tpu_custom_call.1} parent=5 // pred_region
        // Predicated region
        $region37: #{tpu_custom_call.1} parent=35 // pred_check
          %p240 = pneg %p43
        $region38: #{tpu_custom_call.1} parent=35 // pred_check_branch
          %242 = sbr.rel (%p240) target = $region40
        $region39: #{tpu_custom_call.1} parent=35 // pred_region
          %s243 = sand.u32 %s33, 1
          %s244 = scalar_lea.sflag [#allocation3], %s243
          %s245 = sand.u32 %s33, 1
          %s246 = smul.addr %s245, 8
          %s247 = scalar_lea.vmem [#allocation2], %s246
          %s249 = ssub.s32 128, 128
          %250 = vsyncadd %s244, %s249
          %s251 = smul.addr %s23, 128
          %s252 = scalar_lea.hbm %s0, %s251
          %s254 = sshll.u32 %s247, 4
          %s255 = int_to_ptr.vmem [resolvable:$true] %s254
          %257 = dma.hbm_to_vmem [thread:$0]  %s252, 128, %s255, %s244
        $region40: #{tpu_custom_call.1} parent=35 // pred_fallthru
          _
      $region36: #{tpu_custom_call.1} parent=5 // pred_fallthru
        _
      %p258 = scmp.le.s32.totalorder 1, %s23
      %p259 = scmp.lt.s32.totalorder %s23, 4
      %p260 = pnand %p258, %p259
      %p261 = pneg %p260
      // Predicated region
      $region41: #{tpu_custom_call.1} parent=5 // pred_check
        _
      $region42: #{tpu_custom_call.1} parent=5 // pred_check_branch
        %263 = sbr.rel (%p260) target = $region44
      $region43: #{tpu_custom_call.1} parent=5 // pred_region
        %s264 = ssub.s32 %s23, 1
        %s265 = sand.u32 %s36, 1
        %s266 = scalar_lea.sflag [#allocation3], %s265
        %s267 = sand.u32 %s36, 1
        %s268 = smul.addr %s267, 8
        %s269 = scalar_lea.vmem [#allocation2], %s268
        // Predicated region
        $region45: #{tpu_custom_call.1} parent=43 // pred_check
          %p270 = pneg %p49
        $region46: #{tpu_custom_call.1} parent=43 // pred_check_branch
          %272 = sbr.rel (%p270) target = $region48
        $region47: #{tpu_custom_call.1} parent=43 // pred_region
          %273 = dma.done %s266, 128
        $region48: #{tpu_custom_call.1} parent=43 // pred_fallthru
          _
        %s274 = sand.u32 %s36, 1
        %s275 = scalar_lea.sflag [#allocation3], %s274
        %s276 = sand.u32 %s36, 1
        %s277 = smul.addr %s276, 8
        %s278 = scalar_lea.vmem [#allocation2], %s277
        %p279 = pneg %p49
        %p280 = pneg %p46
        %p281 = pneg %p70
        %p282 = pneg %p67
        %p283 = pneg %p91
        %p284 = pneg %p88
        %p285 = pneg %p112
        %p286 = pneg %p109
        %p287 = pneg %p133
        %p288 = pneg %p130
        %p289 = pneg %p154
        %p290 = pneg %p151
        %p291 = pneg %p180
        %p292 = pneg %p177
        %s293 = sand.u32 %s167, 1
        %s294 = scalar_lea.sflag [#allocation4], %s293
        %s295 = sand.u32 %s167, 1
        %s296 = smul.addr %s295, 8
        %s297 = scalar_lea.vmem [#allocation5], %s296
        %p298 = pneg %p206
        %p299 = pneg %p203
        %s300 = sand.u32 %s193, 1
        %s301 = scalar_lea.sflag [#allocation7], %s300
        %s302 = sand.u32 %s193, 1
        %s303 = smul.addr %s302, 8
        %s304 = scalar_lea.vmem [#allocation6], %s303
        %v306 = vld [vmem:[%s269] sm:$0xff]
        %v307 = vld [vmem:[%s1] sm:$0xff]
        %v308 = vsub.f32 1.0, %v307
        %310 = vset.pattern.permute.xlu0 0
        %311 = vperm.xlu0 %310, %v307
        %v312 = vpop.permute.xlu0 %311
        %v314 = vmul.f32 %v312, %v306
        %v315 = vld [vmem:[%s2] sm:$0xf]
        %v316 = vld [vmem:[%s2 + $0x4] sm:$0xf]
        %v317 = vld [vmem:[%s2 + $0x8] sm:$0xf]
        %v318 = vld [vmem:[%s2 + $0xc] sm:$0xf]
        %v319 = vld [vmem:[%s2 + $0x10] sm:$0xf]
        %v320 = vld [vmem:[%s2 + $0x14] sm:$0xf]
        %v321 = vld [vmem:[%s2 + $0x18] sm:$0xf]
        %v322 = vld [vmem:[%s2 + $0x1c] sm:$0xf]
        %v323 = vpack.c.bf16 %v314, %v314
        %v324 = vld [vmem:[%s3] sm:$0xff]
        %v325 = vld [vmem:[%s3 + $0x8] sm:$0xff]
        %v326 = vld [vmem:[%s3 + $0x10] sm:$0xff]
        %v327 = vld [vmem:[%s3 + $0x18] sm:$0xff]
        %v328 = vld [vmem:[%s3 + $0x20] sm:$0xff]
        %v329 = vld [vmem:[%s3 + $0x28] sm:$0xff]
        %v330 = vld [vmem:[%s3 + $0x30] sm:$0xff]
        %v331 = vld [vmem:[%s3 + $0x38] sm:$0xff]
        %333 = vset.pattern.permute.xlu0 0
        %334 = vperm.xlu0 %333, %v324
        %v335 = vpop.permute.xlu0 %334
        %338 = vset.pattern.permute.xlu0 0
        %339 = vperm.xlu0 %338, %v325
        %v340 = vpop.permute.xlu0 %339
        %343 = vset.pattern.permute.xlu0 0
        %344 = vperm.xlu0 %343, %v326
        %v345 = vpop.permute.xlu0 %344
        %348 = vset.pattern.permute.xlu0 0
        %349 = vperm.xlu0 %348, %v327
        %v350 = vpop.permute.xlu0 %349
        %353 = vset.pattern.permute.xlu0 0
        %354 = vperm.xlu0 %353, %v328
        %v355 = vpop.permute.xlu0 %354
        %358 = vset.pattern.permute.xlu0 0
        %359 = vperm.xlu0 %358, %v329
        %v360 = vpop.permute.xlu0 %359
        %363 = vset.pattern.permute.xlu0 0
        %364 = vperm.xlu0 %363, %v330
        %v365 = vpop.permute.xlu0 %364
        %368 = vset.pattern.permute.xlu0 0
        %369 = vperm.xlu0 %368, %v331
        %v370 = vpop.permute.xlu0 %369
        %v380 = vunpack.c.l.b16 %v315
        %v381 = vunpack.c.l.b16 %v316
        %v382 = vunpack.c.l.b16 %v317
        %v383 = vunpack.c.l.b16 %v318
        %v384 = vunpack.c.l.b16 %v319
        %v385 = vunpack.c.l.b16 %v320
        %v386 = vunpack.c.l.b16 %v321
        %v387 = vunpack.c.l.b16 %v322
        %v388 = vpack.c.b16 %v381, %v380
        %v389 = vpack.c.b16 %v383, %v382
        %v390 = vpack.c.b16 %v385, %v384
        %v391 = vpack.c.b16 %v387, %v386
        %vm392 = vcmask 64512
        %v394 = vsel %vm392, %v388, 0
        %v397 = vsel %vm392, %v389, 0
        %v400 = vsel %vm392, %v390, 0
        %v403 = vsel %vm392, %v391, 0
        %vm405 = vcmask 1043456
        %v407 = vsel %vm405, %v323, 0
        %409 = vmatprep.subr.bf16.mxu0 0
        %410 = vmatpush1.bf16.msra.mxu0 %v407
        %411 = vmatprep.subr.bf16.mxu0 0
        %412 = vmatpush1.bf16.msra.mxu0 0
        %413 = vmatprep.subr.bf16.mxu0 0
        %414 = vmatpush1.bf16.msra.mxu0 0
        %415 = vmatprep.subr.bf16.mxu0 0
        %416 = vmatpush1.bf16.msra.mxu0 0
        %417 = vmatprep.subr.bf16.mxu0 0
        %418 = vmatpush1.bf16.msra.mxu0 0
        %419 = vmatprep.subr.bf16.mxu0 0
        %420 = vmatpush1.bf16.msra.mxu0 0
        %421 = vmatprep.subr.bf16.mxu0 0
        %422 = vmatpush1.bf16.msra.mxu0 0
        %423 = vmatprep.subr.bf16.mxu0 0
        %424 = vmatpush1.bf16.msra.mxu0 0
        %425 = vmatprep.subr.bf16.mxu0 0
        %426 = vmatpush1.bf16.msra.mxu0 0
        %427 = vmatprep.subr.bf16.mxu0 0
        %428 = vmatpush1.bf16.msra.mxu0 0
        %429 = vmatprep.subr.bf16.mxu0 0
        %430 = vmatpush1.bf16.msra.mxu0 0
        %431 = vmatprep.subr.bf16.mxu0 0
        %432 = vmatpush1.bf16.msra.mxu0 0
        %433 = vmatprep.subr.bf16.mxu0 0
        %434 = vmatpush1.bf16.msra.mxu0 0
        %435 = vmatprep.subr.bf16.mxu0 0
        %436 = vmatpush1.bf16.msra.mxu0 0
        %437 = vmatprep.subr.bf16.mxu0 0
        %438 = vmatpush1.bf16.msra.mxu0 0
        %439 = vmatprep.subr.bf16.mxu0 0
        %440 = vmatpush1.bf16.msra.mxu0 0
        %441 = vmatprep.mubr.bf16.mxu0 0
        %442 = vmatmul.mubr.bf16.gmra.mrb[0].mxu0 %v394
        %v443 = vpop.f32.mrb[0].mxu0
        %v444 = vadd.f32 %v335, %v443
        %v445 = vpop.f32.mrb[0].mxu0
        %v446 = vpop.f32.mrb[0].mxu0
        %v447 = vadd.f32 %v340, %v446
        %v448 = vpop.f32.mrb[0].mxu0
        %449 = vmatprep.mubr.bf16.mxu0 0
        %450 = vmatmul.mubr.bf16.gmra.mrb[0].mxu0 %v397
        %v451 = vpop.f32.mrb[0].mxu0
        %v452 = vadd.f32 %v345, %v451
        %v453 = vpop.f32.mrb[0].mxu0
        %v454 = vpop.f32.mrb[0].mxu0
        %v455 = vadd.f32 %v350, %v454
        %v456 = vpop.f32.mrb[0].mxu0
        %457 = vmatprep.mubr.bf16.mxu0 0
        %458 = vmatmul.mubr.bf16.gmra.mrb[0].mxu0 %v400
        %v459 = vpop.f32.mrb[0].mxu0
        %v460 = vadd.f32 %v355, %v459
        %v461 = vpop.f32.mrb[0].mxu0
        %v462 = vpop.f32.mrb[0].mxu0
        %v463 = vadd.f32 %v360, %v462
        %v464 = vpop.f32.mrb[0].mxu0
        %465 = vmatprep.mubr.bf16.mxu0 0
        %466 = vmatmul.mubr.bf16.gmra.mrb[0].mxu0 %v403
        %v467 = vpop.f32.mrb[0].mxu0
        %v468 = vadd.f32 %v365, %v467
        %v469 = vpop.f32.mrb[0].mxu0
        %v470 = vpop.f32.mrb[0].mxu0
        %v471 = vadd.f32 %v370, %v470
        %v472 = vpop.f32.mrb[0].mxu0
        %473 = vdwg.mxu0
        %v474 = vtanh.pop %v444
        %v475 = vtanh.pop %v447
        %v476 = vtanh.pop %v452
        %v477 = vtanh.pop %v455
        %v478 = vtanh.pop %v460
        %v479 = vtanh.pop %v463
        %v480 = vtanh.pop %v468
        %v481 = vtanh.pop %v471
        %v482 = vld [vmem:[%s4] sm:$0xf]
        %v483 = vld [vmem:[%s4 + $0x4] sm:$0xf]
        %v484 = vpack.c.bf16 %v475, %v474
        %v485 = vpack.c.bf16 %v477, %v476
        %v486 = vpack.c.bf16 %v479, %v478
        %v487 = vpack.c.bf16 %v481, %v480
        %v488 = vld [vmem:[%s5] sm:$0xff]
        %v489 = vld [vmem:[%s5 + $0x8] sm:$0xff]
        %491 = vset.pattern.permute.xlu0 0
        %492 = vperm.xlu0 %491, %v488
        %v493 = vpop.permute.xlu0 %492
        %496 = vset.pattern.permute.xlu0 0
        %497 = vperm.xlu0 %496, %v489
        %v498 = vpop.permute.xlu0 %497
        %v502 = vunpack.c.l.b16 %v482
        %v503 = vunpack.c.l.b16 %v483
        %v504 = vpack.c.b16 %v503, %v502
        %vm505 = vcmask 523264
        %v507 = vsel %vm505, %v504, 0
        %509 = vmatprep.subr.bf16.mxu0 0
        %510 = vmatpush1.bf16.msra.mxu0 %v484
        %511 = vmatprep.subr.bf16.mxu0 0
        %512 = vmatpush1.bf16.msra.mxu0 %v485
        %513 = vmatprep.subr.bf16.mxu0 0
        %514 = vmatpush1.bf16.msra.mxu0 %v486
        %515 = vmatprep.subr.bf16.mxu0 0
        %516 = vmatpush1.bf16.msra.mxu0 %v487
        %517 = vmatprep.subr.bf16.mxu0 0
        %518 = vmatpush1.bf16.msra.mxu0 0
        %519 = vmatprep.subr.bf16.mxu0 0
        %520 = vmatpush1.bf16.msra.mxu0 0
        %521 = vmatprep.subr.bf16.mxu0 0
        %522 = vmatpush1.bf16.msra.mxu0 0
        %523 = vmatprep.subr.bf16.mxu0 0
        %524 = vmatpush1.bf16.msra.mxu0 0
        %525 = vmatprep.subr.bf16.mxu0 0
        %526 = vmatpush1.bf16.msra.mxu0 0
        %527 = vmatprep.subr.bf16.mxu0 0
        %528 = vmatpush1.bf16.msra.mxu0 0
        %529 = vmatprep.subr.bf16.mxu0 0
        %530 = vmatpush1.bf16.msra.mxu0 0
        %531 = vmatprep.subr.bf16.mxu0 0
        %532 = vmatpush1.bf16.msra.mxu0 0
        %533 = vmatprep.subr.bf16.mxu0 0
        %534 = vmatpush1.bf16.msra.mxu0 0
        %535 = vmatprep.subr.bf16.mxu0 0
        %536 = vmatpush1.bf16.msra.mxu0 0
        %537 = vmatprep.subr.bf16.mxu0 0
        %538 = vmatpush1.bf16.msra.mxu0 0
        %539 = vmatprep.subr.bf16.mxu0 0
        %540 = vmatpush1.bf16.msra.mxu0 0
        %541 = vmatprep.mubr.bf16.mxu0 0
        %542 = vmatmul.mubr.bf16.gmra.mrb[0].mxu0 %v507
        %v543 = vpop.f32.mrb[0].mxu0
        %v544 = vadd.f32 %v493, %v543
        %v545 = vpop.f32.mrb[0].mxu0
        %v546 = vpop.f32.mrb[0].mxu0
        %v547 = vadd.f32 %v498, %v546
        %v548 = vpop.f32.mrb[0].mxu0
        %549 = vdwg.mxu0
        %v550 = vtanh.pop %v544
        %552 = vset.pattern.permute.xlu0 0
        %553 = vperm.xlu0 %552, %v308
        %v554 = vpop.permute.xlu0 %553
        %v556 = vmul.f32 %v550, %v554
        %v557 = vmul.f32 %v547, %v554
        %v558 = vsub.f32 %v306, %v557
        %v559 = vmul.f32 %v554, %v558
        %v560 = vsub.f32 0.0, %v556
        %v561 = vmul.f32 %v560, 1.442695
        %v562 = vpow.pop %v561
        %v563 = vmul.f32 %v559, %v562
        %v564 = vadd.f32 %v563, %v314
        %565 = vst [vmem:[%s297] sm:$0xff] %v564
        %566 = vst [vmem:[%s304] sm:$0xff] %v556
        %s567 = sand.u32 %s167, 1
        %s568 = scalar_lea.sflag [#allocation4], %s567
        %s569 = sand.u32 %s167, 1
        %s570 = smul.addr %s569, 8
        %s571 = scalar_lea.vmem [#allocation5], %s570
        %s572 = sand.u32 %s193, 1
        %s573 = scalar_lea.sflag [#allocation7], %s572
        %s574 = sand.u32 %s193, 1
        %s575 = smul.addr %s574, 8
        %s576 = scalar_lea.vmem [#allocation6], %s575
        // Predicated region
        $region49: #{tpu_custom_call.1} parent=43 // pred_check
          %p577 = pneg %p177
        $region50: #{tpu_custom_call.1} parent=43 // pred_check_branch
          %579 = sbr.rel (%p577) target = $region52
        $region51: #{tpu_custom_call.1} parent=43 // pred_region
          %s581 = ssub.s32 128, 128
          %582 = vsyncadd %s568, %s581
          %s583 = smul.addr %s28, 128
          %s584 = scalar_lea.hbm %s6, %s583
          %s586 = sshll.u32 %s571, 4
          %s587 = int_to_ptr.vmem [resolvable:$true] %s586
          %589 = dma.vmem_to_hbm [thread:$0]  %s587, 128, %s584, %s568
        $region52: #{tpu_custom_call.1} parent=43 // pred_fallthru
          _
        // Predicated region
        $region53: #{tpu_custom_call.1} parent=43 // pred_check
          %p590 = pneg %p203
        $region54: #{tpu_custom_call.1} parent=43 // pred_check_branch
          %592 = sbr.rel (%p590) target = $region56
        $region55: #{tpu_custom_call.1} parent=43 // pred_region
          %s594 = ssub.s32 128, 128
          %595 = vsyncadd %s573, %s594
          %s596 = smul.addr %s28, 128
          %s597 = scalar_lea.hbm %s7, %s596
          %s599 = sshll.u32 %s576, 4
          %s600 = int_to_ptr.vmem [resolvable:$true] %s599
          %602 = dma.vmem_to_hbm [thread:$0]  %s600, 128, %s597, %s573
        $region56: #{tpu_custom_call.1} parent=43 // pred_fallthru
          _
      $region44: #{tpu_custom_call.1} parent=5 // pred_fallthru
        _
      %p603 = scmp.le.s32.totalorder 2, %s23
      // Predicated region
      $region57: #{tpu_custom_call.1} parent=5 // pred_check
        %p604 = pneg %p603
      $region58: #{tpu_custom_call.1} parent=5 // pred_check_branch
        %606 = sbr.rel (%p604) target = $region60
      $region59: #{tpu_custom_call.1} parent=5 // pred_region
        %s607 = ssub.s32 %s23, 2
        // Predicated region
        $region61: #{tpu_custom_call.1} parent=59 // pred_check
          %p608 = pneg %p183
        $region62: #{tpu_custom_call.1} parent=59 // pred_check_branch
          %610 = sbr.rel (%p608) target = $region64
        $region63: #{tpu_custom_call.1} parent=59 // pred_region
          %s611 = sand.u32 %s168, 1
          %s612 = scalar_lea.sflag [#allocation4], %s611
          %s613 = sand.u32 %s168, 1
          %s614 = smul.addr %s613, 8
          %s615 = scalar_lea.vmem [#allocation5], %s614
          %616 = dma.done %s612, 128
        $region64: #{tpu_custom_call.1} parent=59 // pred_fallthru
          _
        // Predicated region
        $region65: #{tpu_custom_call.1} parent=59 // pred_check
          %p617 = pneg %p209
        $region66: #{tpu_custom_call.1} parent=59 // pred_check_branch
          %619 = sbr.rel (%p617) target = $region68
        $region67: #{tpu_custom_call.1} parent=59 // pred_region
          %s620 = sand.u32 %s194, 1
          %s621 = scalar_lea.sflag [#allocation7], %s620
          %s622 = sand.u32 %s194, 1
          %s623 = smul.addr %s622, 8
          %s624 = scalar_lea.vmem [#allocation6], %s623
          %625 = dma.done %s621, 128
        $region68: #{tpu_custom_call.1} parent=59 // pred_fallthru
          _
      $region60: #{tpu_custom_call.1} parent=5 // pred_fallthru
        _
    $region6: #{tpu_custom_call.1} parent=1 // loop_footer
      %s27 = sadd.s32 1, %s23
    $region7: #{tpu_custom_call.1} parent=1 // loop_footer_branch
      %22 = sbr.rel target = $region3
    $region8: #{tpu_custom_call.1} parent=1 // loop_exit
      _
    %626 = vsyncpa [#allocation3], 1
    %s627 = scalar_lea.sflag [#allocation3], 1
    %628 = vsyncpa %s627, 1
    %629 = vsyncpa [#allocation4], 1
    %s630 = scalar_lea.sflag [#allocation4], 1
    %631 = vsyncpa %s630, 1
    %632 = vsyncpa [#allocation7], 1
    %s633 = scalar_lea.sflag [#allocation7], 1
    %634 = vsyncpa %s633, 1

</llo_original>
